<compile_context>
chip_gen: v5e
topology: v5e:2x2
jax: 0.10.0
libtpu: 0.0.40
codegen_flags: <defaults>
</compile_context>

<pallas_src>
import numpy as np

import jax
import jax.numpy as jnp
from jax.experimental import pallas as pl
from jax.experimental.pallas import tpu as pltpu

_LANE = 128      # TPU lane width: pad channel axis to a multiple of this.
_SUBLANE = 8     # f32 sublane count: pack rows to a full (8, 128) tile.


def _film_param_kernel(p_ref, o_ref):
    # Full-tile, lane/sublane-dense identity.  With input_output_aliases the
    # output aliases the input HBM buffer, so the call is effectively
    # dispatch-only (no fresh output allocation, no extra writeback).
    o_ref[...] = p_ref[...]


def _build_unpack_fn(offsets, num_blocks, shape, dtype):
    """One jitted function: Pallas identity kernel + all per-block slices."""
    # Full-array VMEM spec (no explicit block_shape): whole (8, C_padded)
    # buffer is one aligned tile; stores are unmasked.
    full_spec = pl.BlockSpec(memory_space=pltpu.MemorySpace.VMEM)
    copy = pl.pallas_call(
        _film_param_kernel,
        out_shape=jax.ShapeDtypeStruct(shape, dtype),
        in_specs=[full_spec],
        out_specs=full_spec,
        input_output_aliases={0: 0},  # in-place: skip output HBM alloc/writeback
    )

    @jax.jit
    def unpack(packed):
        out = copy(packed)
        gammas, betas = out[0], out[1]
        per_block = []
        for b in range(num_blocks):
            s, e = offsets[b], offsets[b + 1]
            per_block.append((gammas[s:e], betas[s:e]))
        return tuple(per_block)

    return unpack


class FilmLayer:
    """JAX/Pallas port of the PyTorch FilmLayer.

    Parameters are initialized exactly as in the PyTorch __init__:
    gamma_i = ones(num_maps[i]), beta_i = zeros(num_maps[i]).  They live in
    one packed (8, C_padded) device buffer; the per-block views are produced
    by a single fused (kernel + slices) jitted call at construction time, so
    forward() issues zero device dispatches.
    """

    def __init__(self, num_maps, num_blocks, task_dim=None):
        self.num_maps = list(num_maps)
        self.num_blocks = num_blocks
        # Matches the PyTorch attribute (set to 0 and never updated there).
        self.num_generated_params = 0

        offsets = np.cumsum([0] + self.num_maps).tolist()
        c_total = offsets[-1]
        c_padded = max(_LANE, -(-c_total // _LANE) * _LANE)

        # Packed, fully-tiled parameter buffer:
        #   row 0 = all gammas (init 1), row 1 = all betas (init 0),
        #   rows 2..7 and padding lanes are don't-care and never exposed.
        packed = np.zeros((_SUBLANE, c_padded), np.float32)
        packed[0, :c_total] = 1.0
        # TODO(synk): if this layer is trained, optimizer/grad plumbing must
        # map through this packed buffer (unlike PyTorch's ParameterList).
        self.params = jnp.asarray(packed)

        # Single device dispatch, ever: fused identity kernel + all slices.
        unpack = _build_unpack_fn(offsets, self.num_blocks,
                                  self.params.shape, self.params.dtype)
        per_block = unpack(self.params)
        self._block_params = [{"gamma": g, "beta": b} for (g, b) in per_block]

    def forward(self, x):
        # `x` is intentionally unused, matching the PyTorch forward().
        # Zero device dispatches per call: return the prebuilt dict list.
        return list(self._block_params)

    __call__ = forward


if __name__ == "__main__":
    key = jax.random.PRNGKey(0)

    # Small, forward-consistent shapes: NCHW activation (ignored by forward),
    # two FiLM blocks with 4 and 8 channel maps respectively.
    num_maps = [4, 8]
    num_blocks = 2
    x = jax.random.normal(key, (2, 4, 16, 16), dtype=jnp.float32)

    layer = FilmLayer(num_maps, num_blocks)
    block_params = layer(x)

    # Block on results and verify semantics (gamma == ones, beta == zeros).
    assert len(block_params) == num_blocks
    for i, bp in enumerate(block_params):
        g = jax.block_until_ready(bp["gamma"])
        b = jax.block_until_ready(bp["beta"])
        assert g.shape == (num_maps[i],) and b.shape == (num_maps[i],)
        assert bool(jnp.all(g == 1.0)) and bool(jnp.all(b == 0.0))

    # Second forward: must be dispatch-free and identical.
    block_params2 = layer(x)
    assert all(block_params2[i]["gamma"] is block_params[i]["gamma"]
               for i in range(num_blocks))

    print("KERNEL_OK")
</pallas_src>

<mosaic_0001>
module attributes {stable_mosaic.version = 11 : i64} {
  func.func @_film_param_kernel(%arg0: memref<8x128xf32, #tpu.memory_space<vmem>>, %arg1: memref<8x128xf32, #tpu.memory_space<vmem>>) attributes {dimension_semantics = [], scalar_prefetch = 0 : i64, scratch_operands = 0 : i64, tpu.core_type = #tpu.core_type<tc>} {
    %c0 = arith.constant 0 : index
    %c0_0 = arith.constant 0 : index
    %0 = vector.load %arg0[%c0, %c0_0] : memref<8x128xf32, #tpu.memory_space<vmem>>, vector<8x128xf32>
    %c0_1 = arith.constant 0 : index
    %c0_2 = arith.constant 0 : index
    %1 = vector.load %arg1[%c0_1, %c0_2] : memref<8x128xf32, #tpu.memory_space<vmem>>, vector<8x128xf32>
    tpu.vector_store %arg1[%c0_1, %c0_2], %0 {strides = array<i32>} : memref<8x128xf32, #tpu.memory_space<vmem>>, vector<8x128xf32>,
    return
  }
}

</mosaic_0001>

<llo_original>
// kernel: unpack.1
$region0: #{unpack.1}
  #allocation0 [shape = 'u32[]', space=smem, size = 0x4, offset = 0x4, fixed_abs, tag = 'smem constant byte address 0x4 - core index']
  #allocation1 [shape = 'u32[72,128]{1,0:T(1,128)}', space=vmem, size = 0x9000, scoped, tag = 'internal scratch']
  %s0 = inlined_call_operand.vmem [shape: f32[8,128], index: 0, kind: input, shape index: {}, may-alias: {0,1}]
  %s1 = inlined_call_operand.vmem [shape: f32[8,128], index: 1, kind: output, shape index: {}, may-alias: {0,1}]
  %s2 = sld [smem:[#allocation0]]
  $region14: #{unpack.1} parent=0
    _
  %s4 = ssub.s32 1, %s2
  %s5 = scalar_select 0, %s4, %s2
  // Predicated region
  $region2: #{unpack.1} parent=0 // pred_check
    _
  $region3: #{unpack.1} parent=0 // pred_check_branch
    %7 = sbr.rel (0) target = $region5
  $region4: #{unpack.1} parent=0 // pred_region
    _
  $region5: #{unpack.1} parent=0 // pred_fallthru
    _
  %v8 = vld [vmem:[%s0] sm:$0xff]
  %9 = vst [vmem:[%s1] sm:$0xff] %v8
  // Predicated region
  $region6: #{unpack.1} parent=0 // pred_check
    _
  $region7: #{unpack.1} parent=0 // pred_check_branch
    %11 = sbr.rel (0) target = $region9
  $region8: #{unpack.1} parent=0 // pred_region
    _
  $region9: #{unpack.1} parent=0 // pred_fallthru
    _
  // Predicated region
  $region10: #{unpack.1} parent=0 // pred_check
    _
  $region11: #{unpack.1} parent=0 // pred_check_branch
    %13 = sbr.rel (0) target = $region13
  $region12: #{unpack.1} parent=0 // pred_region
    _
  $region13: #{unpack.1} parent=0 // pred_fallthru
    _

</llo_original>
